<compile_context>
chip_gen: v5e
topology: v5e:2x2
jax: 0.10.0
libtpu: 0.0.40
codegen_flags: <defaults>
</compile_context>

<pallas_src>
import jax
import jax.numpy as jnp
import numpy as np
from jax.experimental import pallas as pl
from jax.experimental.pallas import tpu as pltpu


def mtrl_encoder_kernel(x_ref, w_ref, b_ref, o_ref):
    # In-kernel cast of x to the weight dtype (bf16): free VPU work hidden
    # under the input DMA; avoids a separate XLA cast pass over x in HBM.
    x = x_ref[...].astype(w_ref.dtype)
    # MXU matmul with f32 accumulation.
    y = jnp.dot(x, w_ref[...], preferred_element_type=jnp.float32)
    # Epilogue (bias + tanh) in b_ref.dtype: bf16 on v6e/v7x, f32 on v5e.
    y = y.astype(b_ref.dtype) + b_ref[...]
    o_ref[...] = jnp.tanh(y).astype(o_ref.dtype)


def _round_up(n, m):
    return ((n + m - 1) // m) * m


def _epilogue_dtype():
    """bf16 epilogue on chips with bf16 VPU/EUP (v6e/v7x); f32 otherwise."""
    try:
        kind = jax.devices()[0].device_kind.lower()
    except Exception:
        return jnp.float32
    if "v6" in kind or "v7" in kind:
        return jnp.bfloat16
    return jnp.float32  # v5e and older: f32 epilogue is the required/fast path


def mtrl_encoder(x, w, b, *, tile_b=4096, weight_dtype=jnp.bfloat16,
                 out_dtype=jnp.bfloat16, force_pallas=False,
                 small_batch_threshold=1024):
    """x: [B, din], w: [din, hidden] (PyTorch weight.T), b: [hidden] -> [B, hidden]."""
    B, din = x.shape
    din_w, hidden = w.shape
    assert din == din_w, (din, din_w)

    # Small-batch fast path: a standalone pallas_call (launch + ~0.35us/step
    # overhead + separate cast passes) loses to one fused XLA op at this size.
    if not force_pallas and B < small_batch_threshold:
        y = jnp.dot(x.astype(weight_dtype), w.astype(weight_dtype),
                    preferred_element_type=jnp.float32)
        y = y + b.astype(jnp.float32)
        return jnp.tanh(y).astype(out_dtype)

    epi_dtype = _epilogue_dtype()

    # Batch tile: multiple of 8 sublanes, no bigger than the (rounded) problem.
    tile_b = max(8, min(_round_up(tile_b, 8), _round_up(B, 8)))
    # v7x megacore: keep >= 2 grid steps on the "parallel" axis so both
    # TensorCores get work (harmless on single-TC v5e/v6e).
    if B >= 1024:
        tile_b = min(tile_b, _round_up(pl.cdiv(B, 2), 8))

    grid = (pl.cdiv(B, tile_b),)

    w_io = w.astype(weight_dtype)                     # resident in VMEM
    b2d = b.astype(epi_dtype).reshape(1, hidden)      # resident in VMEM

    cost = pl.CostEstimate(
        flops=2 * B * din * hidden,
        transcendentals=B * hidden,
        bytes_accessed=(
            x.size * x.dtype.itemsize
            + w_io.size * w_io.dtype.itemsize
            + b2d.size * b2d.dtype.itemsize
            + B * hidden * jnp.dtype(out_dtype).itemsize
        ),
    )

    # NOTE: when B is not a multiple of tile_b, the trailing x block reads
    # unspecified rows past B; those rows only feed output rows that Pallas
    # masks on writeback, so any garbage/NaN there is benign and never read.
    return pl.pallas_call(
        mtrl_encoder_kernel,
        out_shape=jax.ShapeDtypeStruct((B, hidden), out_dtype),
        grid=grid,
        in_specs=[
            pl.BlockSpec((tile_b, din), lambda i: (i, 0)),    # stream x tiles
            pl.BlockSpec((din, hidden), lambda i: (0, 0)),    # W resident
            pl.BlockSpec((1, hidden), lambda i: (0, 0)),      # b resident
        ],
        out_specs=pl.BlockSpec((tile_b, hidden), lambda i: (i, 0)),
        compiler_params=pltpu.CompilerParams(
            dimension_semantics=("parallel",),   # shard tiles across TCs on v7x
        ),
        cost_estimate=cost,
    )(x, w_io, b2d)


def init_params(key, din=32, hidden_dim=128):
    # Mimics nn.Linear default init: U(-1/sqrt(din), 1/sqrt(din)).
    kw, kb = jax.random.split(key)
    bound = 1.0 / np.sqrt(din)
    # PyTorch weight shape is [hidden, din]; we store its transpose [din, hidden].
    w = jax.random.uniform(kw, (din, hidden_dim), jnp.float32, -bound, bound)
    b = jax.random.uniform(kb, (hidden_dim,), jnp.float32, -bound, bound)
    return w, b


def reference(x, w, b):
    return jnp.tanh(x.astype(jnp.float32) @ w.astype(jnp.float32) + b)


if __name__ == "__main__":
    key = jax.random.PRNGKey(0)
    kx, kp, kx2 = jax.random.split(key, 3)

    din, hidden_dim = 32, 128
    w, b = init_params(kp, din, hidden_dim)

    # Small case from the module spec, forced through the Pallas kernel
    # (single tile, exact-fit path).
    B = 8
    x = jax.random.normal(kx, (B, din), jnp.float32)
    out = jax.block_until_ready(mtrl_encoder(x, w, b, force_pallas=True))
    ref = reference(x, w, b)
    np.testing.assert_allclose(
        np.asarray(out, dtype=np.float32), np.asarray(ref), rtol=2e-2, atol=2e-2
    )

    # Ragged multi-tile case: exercises batch tiling + masked partial final block.
    B2 = 200
    x2 = jax.random.normal(kx2, (B2, din), jnp.float32)
    out2 = jax.block_until_ready(mtrl_encoder(x2, w, b, tile_b=64, force_pallas=True))
    ref2 = reference(x2, w, b)
    np.testing.assert_allclose(
        np.asarray(out2, dtype=np.float32), np.asarray(ref2), rtol=2e-2, atol=2e-2
    )

    # Small-batch fast path (plain fused XLA) consistency check.
    out3 = jax.block_until_ready(mtrl_encoder(x2, w, b))
    np.testing.assert_allclose(
        np.asarray(out3, dtype=np.float32), np.asarray(ref2), rtol=2e-2, atol=2e-2
    )

    print("KERNEL_OK")
</pallas_src>

<mosaic_0001>
module attributes {stable_mosaic.version = 11 : i64} {
  func.func @mtrl_encoder_kernel(%arg0: i32, %arg1: memref<8x32xf32, #tpu.memory_space<vmem>>, %arg2: memref<32x128xbf16, #tpu.memory_space<vmem>>, %arg3: memref<1x128xf32, #tpu.memory_space<vmem>>, %arg4: memref<8x128xbf16, #tpu.memory_space<vmem>>) attributes {dimension_semantics = [#tpu.dimension_semantics<parallel>], iteration_bounds = array<i64: 1>, scalar_prefetch = 0 : i64, scratch_operands = 0 : i64, tpu.core_type = #tpu.core_type<tc>, window_params = [{transform_indices = @transform_0, window_bounds = array<i64: 8, 32>}, {pipeline_mode = #tpu.pipeline_mode<synchronous>, transform_indices = @transform_1, window_bounds = array<i64: 32, 128>}, {pipeline_mode = #tpu.pipeline_mode<synchronous>, transform_indices = @transform_2, window_bounds = array<i64: 1, 128>}, {transform_indices = @transform_3, window_bounds = array<i64: 8, 128>}]} {
    %c0 = arith.constant 0 : index
    %c0_0 = arith.constant 0 : index
    %0 = vector.load %arg1[%c0, %c0_0] : memref<8x32xf32, #tpu.memory_space<vmem>>, vector<8x32xf32>
    %1 = arith.truncf %0 : vector<8x32xf32> to vector<8x32xbf16>
    %c0_1 = arith.constant 0 : index
    %c0_2 = arith.constant 0 : index
    %2 = vector.load %arg2[%c0_1, %c0_2] : memref<32x128xbf16, #tpu.memory_space<vmem>>, vector<32x128xbf16>
    %cst = arith.constant dense<0.000000e+00> : vector<8x128xf32>
    %3 = tpu.matmul %1, %2, %cst {dimension_numbers = #tpu.dot_dimension_numbers<[1], [0], [0], [1], [0, 0, 1, 1], [], []>} : vector<8x32xbf16>, vector<32x128xbf16>, vector<8x128xf32> -> vector<8x128xf32>
    %c0_3 = arith.constant 0 : index
    %c0_4 = arith.constant 0 : index
    %4 = vector.load %arg3[%c0_3, %c0_4] : memref<1x128xf32, #tpu.memory_space<vmem>>, vector<1x128xf32>
    %5 = vector.broadcast %4 : vector<1x128xf32> to vector<8x128xf32>
    %6 = arith.addf %3, %5 : vector<8x128xf32>
    %7 = math.tanh %6 : vector<8x128xf32>
    %8 = arith.truncf %7 : vector<8x128xf32> to vector<8x128xbf16>
    %c0_5 = arith.constant 0 : index
    %c0_6 = arith.constant 0 : index
    %9 = vector.load %arg4[%c0_5, %c0_6] : memref<8x128xbf16, #tpu.memory_space<vmem>>, vector<8x128xbf16>
    tpu.vector_store %arg4[%c0_5, %c0_6], %8 {strides = array<i32>} : memref<8x128xbf16, #tpu.memory_space<vmem>>, vector<8x128xbf16>,
    return
  }
  func.func @transform_0(%arg0: i32) -> (i32, i32) {
    %c0_i32 = arith.constant 0 : i32
    %c0_i32_0 = arith.constant 0 : i32
    return %arg0, %c0_i32 : i32, i32
  }
  func.func @transform_1(%arg0: i32) -> (i32, i32) {
    %c0_i32 = arith.constant 0 : i32
    %c0_i32_0 = arith.constant 0 : i32
    %c0_i32_1 = arith.constant 0 : i32
    return %c0_i32, %c0_i32_0 : i32, i32
  }
  func.func @transform_2(%arg0: i32) -> (i32, i32) {
    %c0_i32 = arith.constant 0 : i32
    %c0_i32_0 = arith.constant 0 : i32
    %c0_i32_1 = arith.constant 0 : i32
    return %c0_i32, %c0_i32_0 : i32, i32
  }
  func.func @transform_3(%arg0: i32) -> (i32, i32) {
    %c0_i32 = arith.constant 0 : i32
    %c0_i32_0 = arith.constant 0 : i32
    return %arg0, %c0_i32 : i32, i32
  }
}

</mosaic_0001>

<llo_original>
// kernel: tpu_custom_call.1
$region0: #{tpu_custom_call.1}
  #allocation0 [shape = 'u32[]', space=smem, size = 0x4, offset = 0x4, fixed_abs, tag = 'smem constant byte address 0x4 - core index']
  #allocation1 [shape = 'u32[72,128]{1,0:T(1,128)}', space=vmem, size = 0x9000, scoped, tag = 'internal scratch']
  %s0 = inlined_call_operand.hbm [shape: f32[8,32], index: 0, kind: input, shape index: {}]
  %s1 = inlined_call_operand.hbm [shape: bf16[32,128], index: 1, kind: input, shape index: {}]
  %s2 = inlined_call_operand.vmem [shape: f32[1,128], index: 2, kind: input, shape index: {}]
  %s3 = inlined_call_operand.hbm [shape: bf16[8,128], index: 3, kind: output, shape index: {}]
  %s4 = sld [smem:[#allocation0]]
  $region30: #{tpu_custom_call.1} parent=0
    _
  %s6 = ssub.s32 1, %s4
  %s7 = scalar_select 0, %s6, %s4
  $region1: #{tpu_custom_call.1} parent=0
    #allocation2 [shape = 'u8[4096]{0}', space=vmem, size = 0x1000, scoped, tag = 'input window, operand 0, single buffered']
    #allocation3 [shape = 's32[1]{0}', space=sflag, size = 0x4, scoped, tag = 'scoped memory for tpu_custom_call.1']
    #allocation4 [shape = 's32[1]{0}', space=sflag, size = 0x4, scoped, tag = 'scoped memory for tpu_custom_call.1']
    #allocation5 [shape = 'u8[8192]{0}', space=vmem, size = 0x2000, scoped, tag = 'input window, operand 1, single buffered']
    #allocation6 [shape = 's32[1]{0}', space=sflag, size = 0x4, scoped, tag = 'scoped memory for tpu_custom_call.1']
    #allocation7 [shape = 'u8[2048]{0}', space=vmem, size = 0x800, scoped, tag = 'output window, operand 0, single buffered']
    %8 = vsyncpa [#allocation3], 0
    %9 = vsyncpa [#allocation6], 0
    %10 = vsyncpa [#allocation4], 0
    // Predicated region
    $region2: #{tpu_custom_call.1} parent=1 // pred_check
      _
    $region3: #{tpu_custom_call.1} parent=1 // pred_check_branch
      %12 = sbr.rel (0) target = $region5
    $region4: #{tpu_custom_call.1} parent=1 // pred_region
      %14 = vsyncadd [#allocation3], 0
      %s16 = sshll.u32 %s0, 4
      %s17 = int_to_ptr.hbm [resolvable:$true] %s16
      %s18 = sshll.u32 [#allocation2], 4
      %s19 = int_to_ptr.vmem [resolvable:$true] %s18
      %21 = dma.hbm_to_vmem [thread:$0]  %s17, 128, %s19, [#allocation3]
    $region5: #{tpu_custom_call.1} parent=1 // pred_fallthru
      _
    // Predicated region
    $region6: #{tpu_custom_call.1} parent=1 // pred_check
      _
    $region7: #{tpu_custom_call.1} parent=1 // pred_check_branch
      %23 = sbr.rel (0) target = $region9
    $region8: #{tpu_custom_call.1} parent=1 // pred_region
      %25 = vsyncadd [#allocation6], 0
      %s26 = sshll.u32 %s1, 4
      %s27 = int_to_ptr.hbm [resolvable:$true] %s26
      %s28 = sshll.u32 [#allocation5], 4
      %s29 = int_to_ptr.vmem [resolvable:$true] %s28
      %34 = dma.hbm_to_vmem [thread:$0]  %s27, 256, %s29, [#allocation6], 64, 64, 4
    $region9: #{tpu_custom_call.1} parent=1 // pred_fallthru
      _
    // Predicated region
    $region10: #{tpu_custom_call.1} parent=1 // pred_check
      _
    $region11: #{tpu_custom_call.1} parent=1 // pred_check_branch
      %36 = sbr.rel (0) target = $region13
    $region12: #{tpu_custom_call.1} parent=1 // pred_region
      _
    $region13: #{tpu_custom_call.1} parent=1 // pred_fallthru
      _
    // Predicated region
    $region14: #{tpu_custom_call.1} parent=1 // pred_check
      _
    $region15: #{tpu_custom_call.1} parent=1 // pred_check_branch
      %38 = sbr.rel (0) target = $region17
    $region16: #{tpu_custom_call.1} parent=1 // pred_region
      %40 = dma.done [#allocation3], 128
    $region17: #{tpu_custom_call.1} parent=1 // pred_fallthru
      _
    // Predicated region
    $region18: #{tpu_custom_call.1} parent=1 // pred_check
      _
    $region19: #{tpu_custom_call.1} parent=1 // pred_check_branch
      %42 = sbr.rel (0) target = $region21
    $region20: #{tpu_custom_call.1} parent=1 // pred_region
      %44 = dma.done [#allocation6], 256
    $region21: #{tpu_custom_call.1} parent=1 // pred_fallthru
      _
    %v46 = vld [vmem:[#allocation2] sm:$0xff]
    %v47 = vpack.c.bf16 %v46, %v46
    %v48 = vld [vmem:[#allocation5] sm:$0xf]
    %v49 = vld [vmem:[#allocation5 + $0x4] sm:$0xf]
    %v50 = vld [vmem:[#allocation5 + $0x8] sm:$0xf]
    %v51 = vld [vmem:[#allocation5 + $0xc] sm:$0xf]
    %v52 = vld [vmem:[%s2] sm:$0x1]
    %v54 = vperm.slane %v52, 0
    %v60 = vunpack.c.l.b16 %v48
    %v61 = vunpack.c.l.b16 %v49
    %v62 = vunpack.c.l.b16 %v50
    %v63 = vunpack.c.l.b16 %v51
    %v64 = vpack.c.b16 %v61, %v60
    %v65 = vpack.c.b16 %v63, %v62
    %vm68 = vcmask 261120
    %v70 = vsel %vm68, %v47, 0
    %72 = vmatpush.bf16.msra.mxu0 0
    %73 = vmatpush.bf16.msra.mxu0 0
    %74 = vmatpush.bf16.msra.mxu0 0
    %75 = vmatpush.bf16.msra.mxu0 0
    %76 = vmatpush.bf16.msra.mxu0 0
    %77 = vmatpush.bf16.msra.mxu0 0
    %78 = vmatpush.bf16.msra.mxu0 %v65
    %79 = vmatpush.bf16.msra.mxu0 %v64
    %80 = vmatmul.bf16.gmra.mxu0 %v70
    %v81 = vpop.f32.mrf.mxu0
    %v82 = vadd.f32 %v54, %v81
    %v83 = vpop.f32.mrf.mxu0
    %84 = vdwg.mxu0
    %v85 = vtanh.pop %v82
    %v86 = vpack.c.bf16 %v85, %v85
    %87 = vst [vmem:[#allocation7] sm:$0xf] %v86
    // Predicated region
    $region22: #{tpu_custom_call.1} parent=1 // pred_check
      _
    $region23: #{tpu_custom_call.1} parent=1 // pred_check_branch
      %89 = sbr.rel (0) target = $region25
    $region24: #{tpu_custom_call.1} parent=1 // pred_region
      %91 = vsyncadd [#allocation4], 0
      %s93 = sshll.u32 [#allocation7], 4
      %s94 = int_to_ptr.vmem [resolvable:$true] %s93
      %s95 = sshll.u32 %s3, 4
      %s96 = int_to_ptr.hbm [resolvable:$true] %s95
      %98 = dma.vmem_to_hbm [thread:$0]  %s94, 64, %s96, [#allocation4]
    $region25: #{tpu_custom_call.1} parent=1 // pred_fallthru
      _
    // Predicated region
    $region26: #{tpu_custom_call.1} parent=1 // pred_check
      _
    $region27: #{tpu_custom_call.1} parent=1 // pred_check_branch
      %100 = sbr.rel (0) target = $region29
    $region28: #{tpu_custom_call.1} parent=1 // pred_region
      %102 = dma.done [#allocation4], 64
    $region29: #{tpu_custom_call.1} parent=1 // pred_fallthru
      _
    %103 = vsyncpa [#allocation3], 1
    %104 = vsyncpa [#allocation6], 1
    %105 = vsyncpa [#allocation4], 1

</llo_original>
